<compile_context>
chip_gen: v7x
topology: tpu7x:2x2x1
jax: 0.10.0
libtpu: 0.0.40
codegen_flags: <defaults>
</compile_context>

<pallas_src>
import jax
import jax.numpy as jnp
from jax.experimental import pallas as pl
from jax.experimental.pallas import tpu as pltpu


_SMALL_COPY_BYTES = 1 * 1024 * 1024        # below this, XLA's native copy wins
_CHUNK_THRESHOLD_BYTES = 16 * 1024 * 1024  # chunk the DMA above this size
_MIN_CHUNK_BYTES = 4 * 1024 * 1024         # keep each chunk >= a few MiB
_MAX_CHUNKS = 8                            # max outstanding DMA descriptors


def _whole_clone_kernel(x_hbm_ref, o_hbm_ref, copy_sems):
    # Single whole-array HBM->HBM DMA; no VMEM round trip, no vld/vst.
    cp = pltpu.make_async_copy(x_hbm_ref, o_hbm_ref, copy_sems.at[0])
    cp.start()
    cp.wait()


def _make_chunked_clone_kernel(chunk_bounds):
    # chunk_bounds: static tuple of (start_row, num_rows) along the leading dim.
    def kernel(x_hbm_ref, o_hbm_ref, copy_sems):
        copies = []
        # Issue every descriptor first (multiple outstanding DMAs hide
        # per-descriptor issue latency), then wait on all of them.
        for c, (start, size) in enumerate(chunk_bounds):
            cp = pltpu.make_async_copy(
                x_hbm_ref.at[pl.ds(start, size)],
                o_hbm_ref.at[pl.ds(start, size)],
                copy_sems.at[c],
            )
            cp.start()
            copies.append(cp)
        for cp in copies:
            cp.wait()
    return kernel


@jax.jit
def _dma_clone(x):
    """Bit-exact HBM->HBM copy of `x` via a gridless Pallas DMA kernel."""
    nbytes = x.size * x.dtype.itemsize

    if x.ndim == 0:
        kernel = _whole_clone_kernel
        num_sems = 1
    else:
        lead = x.shape[0]
        if nbytes >= _CHUNK_THRESHOLD_BYTES and lead >= 2:
            # Enough chunks to overlap descriptor issue, but each chunk stays
            # >= _MIN_CHUNK_BYTES so per-DMA overhead remains negligible.
            num_chunks = int(min(_MAX_CHUNKS, lead,
                                 max(1, nbytes // _MIN_CHUNK_BYTES)))
        else:
            num_chunks = 1
        if num_chunks == 1:
            kernel = _whole_clone_kernel
            num_sems = 1
        else:
            chunk_rows = pl.cdiv(lead, num_chunks)
            chunk_bounds = tuple(
                (s, min(chunk_rows, lead - s))
                for s in range(0, lead, chunk_rows)
            )
            kernel = _make_chunked_clone_kernel(chunk_bounds)
            num_sems = len(chunk_bounds)

    return pl.pallas_call(
        kernel,
        out_shape=jax.ShapeDtypeStruct(x.shape, x.dtype),
        in_specs=[pl.BlockSpec(memory_space=pl.ANY)],   # leave input in HBM
        out_specs=pl.BlockSpec(memory_space=pl.ANY),    # output stays in HBM
        scratch_shapes=[pltpu.SemaphoreType.DMA((num_sems,))],
        cost_estimate=pl.CostEstimate(
            flops=0, transcendentals=0, bytes_accessed=2 * nbytes),
    )(x)


def identity_noise(encoded, cover_img=None, force_copy=False):
    """Identity noise layer.

    Matches `Identity.forward(encoded, cover_img=None) -> encoded.clone()`.
    JAX arrays are immutable, so returning `encoded` is observationally
    identical to PyTorch's `.clone()` and costs zero HBM traffic (default).
    Pass `force_copy=True` if a distinct device buffer is genuinely required
    (e.g. for buffer-donation reasons); that path uses the Pallas DMA clone
    for non-tiny tensors.
    """
    del cover_img  # unused, same as the reference module
    x = jnp.asarray(encoded)
    if not force_copy:
        return x
    nbytes = x.size * x.dtype.itemsize
    if x.size == 0 or nbytes < _SMALL_COPY_BYTES:
        # Tiny copies: XLA's native copy is cheaper, fusible, and elidable.
        return jnp.copy(x)
    return _dma_clone(x)


if __name__ == "__main__":
    key = jax.random.PRNGKey(0)
    k1, k2, k3, k4 = jax.random.split(key, 4)

    # 1) Default path at the module's small NCHW shape: clone is a semantic
    #    no-op in JAX, so the input is returned directly (free).
    enc_small = jax.random.normal(k1, (2, 4, 16, 16), dtype=jnp.float32)
    cov_small = jax.random.normal(k2, (2, 4, 16, 16), dtype=jnp.float32)
    out_small = jax.block_until_ready(identity_noise(enc_small, cov_small))
    assert out_small.shape == enc_small.shape
    assert out_small.dtype == enc_small.dtype
    assert bool(jnp.all(out_small == enc_small))

    # 2) Forced distinct-buffer clone, 2 MiB f32 -> single-descriptor Pallas
    #    HBM->HBM DMA kernel.
    enc_mid = jax.random.normal(k3, (2, 4, 256, 256), dtype=jnp.float32)
    out_mid = jax.block_until_ready(identity_noise(enc_mid, force_copy=True))
    assert out_mid.shape == enc_mid.shape
    assert out_mid.dtype == enc_mid.dtype
    assert bool(jnp.all(out_mid == enc_mid))

    # 3) Forced clone, 16 MiB f32 -> chunked multi-descriptor DMA path
    #    (4 outstanding DMAs of 4 MiB each).
    enc_big = jax.random.normal(k4, (4, 4, 512, 512), dtype=jnp.float32)
    out_big = jax.block_until_ready(identity_noise(enc_big, force_copy=True))
    assert out_big.shape == enc_big.shape
    assert out_big.dtype == enc_big.dtype
    assert bool(jnp.all(out_big == enc_big))

    # 4) Tiny forced clone (bf16) stays on XLA's native copy.
    enc_bf16 = jax.random.normal(k1, (2, 4, 16, 16)).astype(jnp.bfloat16)
    out_bf16 = jax.block_until_ready(identity_noise(enc_bf16, force_copy=True))
    assert out_bf16.shape == enc_bf16.shape
    assert out_bf16.dtype == enc_bf16.dtype
    assert bool(jnp.all(out_bf16 == enc_bf16))

    print("KERNEL_OK")
</pallas_src>

<mosaic_0001>
module attributes {stable_mosaic.version = 11 : i64} {
  func.func @_whole_clone_kernel(%arg0: memref<2x4x256x256xf32, #tpu.memory_space<any>>, %arg1: memref<2x4x256x256xf32, #tpu.memory_space<any>>, %arg2: memref<1x!tpu.dma_semaphore, #tpu.memory_space<semaphore_mem>>) attributes {dimension_semantics = [], scalar_prefetch = 0 : i64, scratch_operands = 1 : i64, tpu.core_type = #tpu.core_type<tc>} {
    %c0_i32 = arith.constant 0 : i32
    %0 = tpu.memref_slice %arg2[%c0_i32] : memref<1x!tpu.dma_semaphore, #tpu.memory_space<semaphore_mem>> -> memref<1x!tpu.dma_semaphore, #tpu.memory_space<semaphore_mem>>
    %1 = tpu.memref_squeeze %0 : memref<1x!tpu.dma_semaphore, #tpu.memory_space<semaphore_mem>> -> memref<!tpu.dma_semaphore, #tpu.memory_space<semaphore_mem>>
    tpu.enqueue_dma source(%arg0 : memref<2x4x256x256xf32, #tpu.memory_space<any>>) target(%arg1 : memref<2x4x256x256xf32, #tpu.memory_space<any>>) target_semaphore(%1 : memref<!tpu.dma_semaphore, #tpu.memory_space<semaphore_mem>>)
    %c0_i32_0 = arith.constant 0 : i32
    %2 = tpu.memref_slice %arg2[%c0_i32_0] : memref<1x!tpu.dma_semaphore, #tpu.memory_space<semaphore_mem>> -> memref<1x!tpu.dma_semaphore, #tpu.memory_space<semaphore_mem>>
    %3 = tpu.memref_squeeze %2 : memref<1x!tpu.dma_semaphore, #tpu.memory_space<semaphore_mem>> -> memref<!tpu.dma_semaphore, #tpu.memory_space<semaphore_mem>>
    tpu.wait_dma2 semaphore(%3 : memref<!tpu.dma_semaphore, #tpu.memory_space<semaphore_mem>>) src(%arg0 : memref<2x4x256x256xf32, #tpu.memory_space<any>>) dst(%arg1 : memref<2x4x256x256xf32, #tpu.memory_space<any>>)
    return
  }
}

</mosaic_0001>

<llo_original>
// kernel: _dma_clone.1
$region0: #{_dma_clone.1}
  #allocation0 [shape = 'u32[]', space=smem, size = 0x4, offset = 0x4, fixed_abs, tag = 'smem constant byte address 0x4 - core index']
  #allocation1 [shape = 'u32[144,128]{1,0:T(1,128)}', space=vmem, size = 0x12000, scoped, tag = 'internal scratch']
  #allocation2 [shape = 's32[1]{0}', space=sflag, size = 0x4, scoped, tag = 'scratch operand']
  #allocation3 [shape = 's32[]', space=sflag, size = 0x4, offset = 0, fixed_abs, tag = 'sflag constant byte address 0x0 - dummy sync flag']
  #allocation4 [shape = 'u32[0]{0}', space=smem, size = 0, offset = 0, fixed_abs, tag = 'smem constant byte address 0x0 - null']
  %s0 = inlined_call_operand.hbm [shape: f32[2,4,256,256], index: 0, kind: input, shape index: {}]
  %s1 = inlined_call_operand.hbm [shape: f32[2,4,256,256], index: 1, kind: output, shape index: {}]
  %s2 = sld [smem:[#allocation0]]
  $region2: #{_dma_clone.1} parent=0
    _
  %s4 = ssub.s32 1, %s2
  %s5 = scalar_select 0, %s4, %s2
  %s7 = sshll.u32 1, 14
  %s8 = sxor.u32 4294967295, %s7
  %s11 = sshll.u32 3, 24
  %s12 = sxor.u32 4294967295, %s11
  %s13 = sand.u32 0, %s12
  %s15 = sor.u32 %s13, 0
  %18 = dma.general %s0, 65536, %s1, [#allocation2], [#allocation3], [#allocation4], %s15, 0
  %s19 = smul.u32 8, 2
  %s20 = smul.u32 %s19, 4
  %s21 = smul.u32 %s20, 32
  %s22 = smul.u32 %s21, 2
  %s23 = sshll.u32 %s22, 4
  %24 = dma.done [#allocation2], %s23
  %25 = vsyncmov [#allocation2]
  %s26 = vpop.sfrf %25
  %p27 = scmp.eq.s32.totalorder %s26, 0
  %p28 = pneg %p27
  %30 = shalt.err (%p28)

</llo_original>
